<compile_context>
chip_gen: v6e
topology: v6e:2x2x1
jax: 0.10.0
libtpu: 0.0.40
codegen_flags: <defaults>
</compile_context>

<pallas_src>
import jax
import jax.numpy as jnp
from jax.experimental import pallas as pl
from jax.experimental.pallas import tpu as pltpu


def _round_up(x, m):
    return ((x + m - 1) // m) * m


def _multi_classifier_kernel(x_ref, w_ref, b_ref, o_ref):
    """x_ref: (TB, C_pad, HW)  w_ref: (C_pad, N_pad)  b_ref: (1, N_pad)  o_ref: (TB, N_pad)."""
    # Spatial sum (cross-lane reduce, XLU slot); the 1/HW scale is folded into w.
    # Keep the accumulation in f32 even if inputs arrive as bf16.
    pooled = jnp.sum(x_ref[...].astype(jnp.float32), axis=-1)          # (TB, C_pad)
    out = jnp.dot(pooled, w_ref[...], preferred_element_type=jnp.float32)
    o_ref[...] = (out + b_ref[...]).astype(o_ref.dtype)                # VPU bias add


def prepare_fused_params(params, in_channels, num_classes, pool_elems):
    """One-time parameter prep.

    params : list of (weight (K, C_i), bias (K,)) in torch nn.Linear layout.
    Returns:
      fused_w : (C_pad, N_pad) f32 block-diagonal weight slab with the 1/HW
                pooling scale folded in; C_pad/N_pad are multiples of 128.
      fused_b : (1, N_pad) f32 bias row (padded columns are zero).
    """
    num_enc = len(params)
    c_total = sum(in_channels)
    c_pad = _round_up(c_total, 128)
    n_cols = num_enc * num_classes
    n_pad = _round_up(n_cols, 128)

    w = jnp.zeros((c_pad, n_pad), jnp.float32)
    b = jnp.zeros((1, n_pad), jnp.float32)
    row = 0
    for i, ((wi, bi), c) in enumerate(zip(params, in_channels)):
        col = i * num_classes
        w = w.at[row:row + c, col:col + num_classes].set(
            jnp.transpose(wi).astype(jnp.float32) / float(pool_elems))
        b = b.at[0, col:col + num_classes].set(bi.astype(jnp.float32))
        row += c
    return w, b


def multi_classifier_forward(encodings, fused_w, fused_b, num_classes,
                             *, max_batch_tile=128):
    """Fused MultiClassifier forward: list of NCHW encodings -> list of logits."""
    num_enc = len(encodings)
    batch = encodings[0].shape[0]
    hw = encodings[0].shape[2] * encodings[0].shape[3]
    c_pad, n_pad = fused_w.shape

    # Single stacked input stream (free reshapes + one concat, done by XLA
    # outside the kernel), zero-padded to (B_pad, C_pad, HW).
    xs = [x.reshape(x.shape[0], x.shape[1], -1) for x in encodings]
    x = jnp.concatenate(xs, axis=1) if num_enc > 1 else xs[0]
    c_total = x.shape[1]

    tb = min(max_batch_tile, _round_up(batch, 8))    # sublane-aligned batch tile
    b_pad = _round_up(batch, tb)
    x = jnp.pad(x, ((0, b_pad - batch), (0, c_pad - c_total), (0, 0)))

    cost = pl.CostEstimate(
        flops=2 * b_pad * c_pad * n_pad + b_pad * c_pad * hw,
        transcendentals=0,
        bytes_accessed=(x.size + fused_w.size + fused_b.size + b_pad * n_pad) * 4,
    )

    out = pl.pallas_call(
        _multi_classifier_kernel,
        out_shape=jax.ShapeDtypeStruct((b_pad, n_pad), jnp.float32),
        grid_spec=pltpu.PrefetchScalarGridSpec(
            num_scalar_prefetch=0,
            grid=(b_pad // tb,),
            in_specs=[
                pl.BlockSpec((tb, c_pad, hw), lambda i: (i, 0, 0)),
                pl.BlockSpec((c_pad, n_pad), lambda i: (0, 0)),   # grid-invariant weights
                pl.BlockSpec((1, n_pad), lambda i: (0, 0)),       # grid-invariant bias
            ],
            out_specs=pl.BlockSpec((tb, n_pad), lambda i: (i, 0)),
        ),
        compiler_params=pltpu.CompilerParams(
            dimension_semantics=("parallel",)),
        cost_estimate=cost,
    )(x, fused_w, fused_b)

    # Drop padded batch rows and slice per-classifier logits off the lane-dense
    # slab (padded columns are exactly zero).
    out = out[:batch]
    return [out[:, i * num_classes:(i + 1) * num_classes] for i in range(num_enc)]


def init_multi_classifier_params(key, in_channels_list, num_classes=10):
    """Deterministic synthetic parameters (torch nn.Linear shapes)."""
    params = []
    for i, c in enumerate(in_channels_list):
        kw, kb = jax.random.split(jax.random.fold_in(key, i))
        bound = 1.0 / jnp.sqrt(jnp.float32(c))
        w = jax.random.uniform(kw, (num_classes, c), jnp.float32, -bound, bound)
        b = jax.random.uniform(kb, (num_classes,), jnp.float32, -bound, bound)
        params.append((w, b))
    return params


if __name__ == "__main__":
    key = jax.random.PRNGKey(0)
    num_classes = 10
    batch = 2
    in_channels = [32, 64]          # one classifier per encoding layer
    spatial = 7                     # AvgPool2d((7,7)) -> 1x1 output

    params = init_multi_classifier_params(key, in_channels, num_classes)
    fused_w, fused_b = prepare_fused_params(params, in_channels, num_classes,
                                            pool_elems=spatial * spatial)

    enc_keys = jax.random.split(jax.random.fold_in(key, 1000), len(in_channels))
    encodings = [
        jax.random.normal(k, (batch, c, spatial, spatial), jnp.float32)
        for k, c in zip(enc_keys, in_channels)
    ]

    outs = multi_classifier_forward(encodings, fused_w, fused_b, num_classes)
    outs = [jax.block_until_ready(o) for o in outs]

    # Pure-JAX reference (avg pool + linear) per classifier.
    for x, (w, b), o in zip(encodings, params, outs):
        pooled = jnp.mean(x, axis=(2, 3))           # (B, C)
        ref = pooled @ w.T + b                      # (B, K)
        assert o.shape == (batch, num_classes)
        assert jnp.allclose(o, ref, atol=1e-4, rtol=1e-4), "mismatch vs reference"

    print("KERNEL_OK")
</pallas_src>

<mosaic_0001>
module attributes {stable_mosaic.version = 11 : i64} {
  func.func @_multi_classifier_kernel(%arg0: i32, %arg1: memref<8x128x49xf32, #tpu.memory_space<vmem>>, %arg2: memref<128x128xf32, #tpu.memory_space<vmem>>, %arg3: memref<1x128xf32, #tpu.memory_space<vmem>>, %arg4: memref<8x128xf32, #tpu.memory_space<vmem>>) attributes {dimension_semantics = [#tpu.dimension_semantics<parallel>], iteration_bounds = array<i64: 1>, scalar_prefetch = 0 : i64, scratch_operands = 0 : i64, tpu.core_type = #tpu.core_type<tc>, window_params = [{transform_indices = @transform_0, window_bounds = array<i64: 8, 128, 49>}, {pipeline_mode = #tpu.pipeline_mode<synchronous>, transform_indices = @transform_1, window_bounds = array<i64: 128, 128>}, {pipeline_mode = #tpu.pipeline_mode<synchronous>, transform_indices = @transform_2, window_bounds = array<i64: 1, 128>}, {transform_indices = @transform_3, window_bounds = array<i64: 8, 128>}]} {
    %c0 = arith.constant 0 : index
    %c0_0 = arith.constant 0 : index
    %c0_1 = arith.constant 0 : index
    %0 = vector.load %arg1[%c0, %c0_0, %c0_1] : memref<8x128x49xf32, #tpu.memory_space<vmem>>, vector<8x128x49xf32>
    %cst = arith.constant dense<0.000000e+00> : vector<8x128xf32>
    %1 = vector.multi_reduction <add>, %0, %cst [2] : vector<8x128x49xf32> to vector<8x128xf32>
    %c0_2 = arith.constant 0 : index
    %c0_3 = arith.constant 0 : index
    %2 = vector.load %arg2[%c0_2, %c0_3] : memref<128x128xf32, #tpu.memory_space<vmem>>, vector<128x128xf32>
    %cst_4 = arith.constant dense<0.000000e+00> : vector<8x128xf32>
    %3 = tpu.matmul %1, %2, %cst_4 {dimension_numbers = #tpu.dot_dimension_numbers<[1], [0], [0], [1], [0, 0, 1, 1], [], []>} : vector<8x128xf32>, vector<128x128xf32>, vector<8x128xf32> -> vector<8x128xf32>
    %c0_5 = arith.constant 0 : index
    %c0_6 = arith.constant 0 : index
    %4 = vector.load %arg3[%c0_5, %c0_6] : memref<1x128xf32, #tpu.memory_space<vmem>>, vector<1x128xf32>
    %5 = vector.broadcast %4 : vector<1x128xf32> to vector<8x128xf32>
    %6 = arith.addf %3, %5 : vector<8x128xf32>
    %c0_7 = arith.constant 0 : index
    %c0_8 = arith.constant 0 : index
    %7 = vector.load %arg4[%c0_7, %c0_8] : memref<8x128xf32, #tpu.memory_space<vmem>>, vector<8x128xf32>
    tpu.vector_store %arg4[%c0_7, %c0_8], %6 {strides = array<i32>} : memref<8x128xf32, #tpu.memory_space<vmem>>, vector<8x128xf32>,
    return
  }
  func.func @transform_0(%arg0: i32) -> (i32, i32, i32) {
    %c0_i32 = arith.constant 0 : i32
    %c0_i32_0 = arith.constant 0 : i32
    %c0_i32_1 = arith.constant 0 : i32
    return %arg0, %c0_i32, %c0_i32_0 : i32, i32, i32
  }
  func.func @transform_1(%arg0: i32) -> (i32, i32) {
    %c0_i32 = arith.constant 0 : i32
    %c0_i32_0 = arith.constant 0 : i32
    %c0_i32_1 = arith.constant 0 : i32
    return %c0_i32, %c0_i32_0 : i32, i32
  }
  func.func @transform_2(%arg0: i32) -> (i32, i32) {
    %c0_i32 = arith.constant 0 : i32
    %c0_i32_0 = arith.constant 0 : i32
    %c0_i32_1 = arith.constant 0 : i32
    return %c0_i32, %c0_i32_0 : i32, i32
  }
  func.func @transform_3(%arg0: i32) -> (i32, i32) {
    %c0_i32 = arith.constant 0 : i32
    %c0_i32_0 = arith.constant 0 : i32
    return %arg0, %c0_i32 : i32, i32
  }
}

</mosaic_0001>

<llo_original>
// kernel: tpu_custom_call.1
$region0: #{tpu_custom_call.1}
  #allocation0 [shape = 'u32[]', space=smem, size = 0x4, offset = 0x4, fixed_abs, tag = 'smem constant byte address 0x4 - core index']
  #allocation1 [shape = 'u32[144,128]{1,0:T(1,128)}', space=vmem, size = 0x12000, scoped, tag = 'internal scratch']
  %s0 = inlined_call_operand.vmem [shape: f32[8,128,49], index: 0, kind: input, shape index: {}]
  %s1 = inlined_call_operand.vmem [shape: f32[128,128], index: 1, kind: input, shape index: {}]
  %s2 = inlined_call_operand.vmem [shape: f32[1,128], index: 2, kind: input, shape index: {}]
  %s3 = inlined_call_operand.hbm [shape: f32[8,128], index: 3, kind: output, shape index: {}]
  %s4 = sld [smem:[#allocation0]]
  $region22: #{tpu_custom_call.1} parent=0
    _
  %s6 = ssub.s32 1, %s4
  %s7 = scalar_select 0, %s6, %s4
  $region1: #{tpu_custom_call.1} parent=0
    #allocation2 [shape = 'u8[4096]{0}', space=vmem, size = 0x1000, scoped, tag = 'output window, operand 0, single buffered']
    #allocation3 [shape = 's32[1]{0}', space=sflag, size = 0x4, scoped, tag = 'scoped memory for tpu_custom_call.1']
    %8 = vsyncpa [#allocation3], 0
    // Predicated region
    $region2: #{tpu_custom_call.1} parent=1 // pred_check
      _
    $region3: #{tpu_custom_call.1} parent=1 // pred_check_branch
      %10 = sbr.rel (0) target = $region5
    $region4: #{tpu_custom_call.1} parent=1 // pred_region
      _
    $region5: #{tpu_custom_call.1} parent=1 // pred_fallthru
      _
    // Predicated region
    $region6: #{tpu_custom_call.1} parent=1 // pred_check
      _
    $region7: #{tpu_custom_call.1} parent=1 // pred_check_branch
      %12 = sbr.rel (0) target = $region9
    $region8: #{tpu_custom_call.1} parent=1 // pred_region
      _
    $region9: #{tpu_custom_call.1} parent=1 // pred_fallthru
      _
    // Predicated region
    $region10: #{tpu_custom_call.1} parent=1 // pred_check
      _
    $region11: #{tpu_custom_call.1} parent=1 // pred_check_branch
      %14 = sbr.rel (0) target = $region13
    $region12: #{tpu_custom_call.1} parent=1 // pred_region
      _
    $region13: #{tpu_custom_call.1} parent=1 // pred_fallthru
      _
    %v15 = vld [vmem:[%s0] sm:$0xff]
    %v16 = vld [vmem:[%s0 + $0x8] sm:$0xff]
    %v17 = vld [vmem:[%s0 + $0x10] sm:$0xff]
    %v18 = vld [vmem:[%s0 + $0x18] sm:$0xff]
    %v19 = vld [vmem:[%s0 + $0x20] sm:$0xff]
    %v20 = vld [vmem:[%s0 + $0x28] sm:$0xff]
    %v21 = vld [vmem:[%s0 + $0x30] sm:$0xff]
    %v22 = vld [vmem:[%s0 + $0x38] sm:$0xff]
    %v23 = vld [vmem:[%s0 + $0x40] sm:$0xff]
    %v24 = vld [vmem:[%s0 + $0x48] sm:$0xff]
    %v25 = vld [vmem:[%s0 + $0x50] sm:$0xff]
    %v26 = vld [vmem:[%s0 + $0x58] sm:$0xff]
    %v27 = vld [vmem:[%s0 + $0x60] sm:$0xff]
    %v28 = vld [vmem:[%s0 + $0x68] sm:$0xff]
    %v29 = vld [vmem:[%s0 + $0x70] sm:$0xff]
    %v30 = vld [vmem:[%s0 + $0x78] sm:$0xff]
    %v31 = vld [vmem:[%s0 + $0x80] sm:$0xff]
    %v32 = vld [vmem:[%s0 + $0x88] sm:$0xff]
    %v33 = vld [vmem:[%s0 + $0x90] sm:$0xff]
    %v34 = vld [vmem:[%s0 + $0x98] sm:$0xff]
    %v35 = vld [vmem:[%s0 + $0xa0] sm:$0xff]
    %v36 = vld [vmem:[%s0 + $0xa8] sm:$0xff]
    %v37 = vld [vmem:[%s0 + $0xb0] sm:$0xff]
    %v38 = vld [vmem:[%s0 + $0xb8] sm:$0xff]
    %v39 = vld [vmem:[%s0 + $0xc0] sm:$0xff]
    %v40 = vld [vmem:[%s0 + $0xc8] sm:$0xff]
    %v41 = vld [vmem:[%s0 + $0xd0] sm:$0xff]
    %v42 = vld [vmem:[%s0 + $0xd8] sm:$0xff]
    %v43 = vld [vmem:[%s0 + $0xe0] sm:$0xff]
    %v44 = vld [vmem:[%s0 + $0xe8] sm:$0xff]
    %v45 = vld [vmem:[%s0 + $0xf0] sm:$0xff]
    %v46 = vld [vmem:[%s0 + $0xf8] sm:$0xff]
    %v47 = vld [vmem:[%s0 + $0x100] sm:$0xff]
    %v48 = vld [vmem:[%s0 + $0x108] sm:$0xff]
    %v49 = vld [vmem:[%s0 + $0x110] sm:$0xff]
    %v50 = vld [vmem:[%s0 + $0x118] sm:$0xff]
    %v51 = vld [vmem:[%s0 + $0x120] sm:$0xff]
    %v52 = vld [vmem:[%s0 + $0x128] sm:$0xff]
    %v53 = vld [vmem:[%s0 + $0x130] sm:$0xff]
    %v54 = vld [vmem:[%s0 + $0x138] sm:$0xff]
    %v55 = vld [vmem:[%s0 + $0x140] sm:$0xff]
    %v56 = vld [vmem:[%s0 + $0x148] sm:$0xff]
    %v57 = vld [vmem:[%s0 + $0x150] sm:$0xff]
    %v58 = vld [vmem:[%s0 + $0x158] sm:$0xff]
    %v59 = vld [vmem:[%s0 + $0x160] sm:$0xff]
    %v60 = vld [vmem:[%s0 + $0x168] sm:$0xff]
    %v61 = vld [vmem:[%s0 + $0x170] sm:$0xff]
    %v62 = vld [vmem:[%s0 + $0x178] sm:$0xff]
    %v63 = vld [vmem:[%s0 + $0x180] sm:$0xff]
    %v64 = vld [vmem:[%s0 + $0x188] sm:$0xff]
    %v65 = vld [vmem:[%s0 + $0x190] sm:$0xff]
    %v66 = vld [vmem:[%s0 + $0x198] sm:$0xff]
    %v67 = vld [vmem:[%s0 + $0x1a0] sm:$0xff]
    %v68 = vld [vmem:[%s0 + $0x1a8] sm:$0xff]
    %v69 = vld [vmem:[%s0 + $0x1b0] sm:$0xff]
    %v70 = vld [vmem:[%s0 + $0x1b8] sm:$0xff]
    %v71 = vld [vmem:[%s0 + $0x1c0] sm:$0xff]
    %v72 = vld [vmem:[%s0 + $0x1c8] sm:$0xff]
    %v73 = vld [vmem:[%s0 + $0x1d0] sm:$0xff]
    %v74 = vld [vmem:[%s0 + $0x1d8] sm:$0xff]
    %v75 = vld [vmem:[%s0 + $0x1e0] sm:$0xff]
    %v76 = vld [vmem:[%s0 + $0x1e8] sm:$0xff]
    %v77 = vld [vmem:[%s0 + $0x1f0] sm:$0xff]
    %v78 = vld [vmem:[%s0 + $0x1f8] sm:$0xff]
    %v79 = vld [vmem:[%s0 + $0x200] sm:$0xff]
    %v80 = vld [vmem:[%s0 + $0x208] sm:$0xff]
    %v81 = vld [vmem:[%s0 + $0x210] sm:$0xff]
    %v82 = vld [vmem:[%s0 + $0x218] sm:$0xff]
    %v83 = vld [vmem:[%s0 + $0x220] sm:$0xff]
    %v84 = vld [vmem:[%s0 + $0x228] sm:$0xff]
    %v85 = vld [vmem:[%s0 + $0x230] sm:$0xff]
    %v86 = vld [vmem:[%s0 + $0x238] sm:$0xff]
    %v87 = vld [vmem:[%s0 + $0x240] sm:$0xff]
    %v88 = vld [vmem:[%s0 + $0x248] sm:$0xff]
    %v89 = vld [vmem:[%s0 + $0x250] sm:$0xff]
    %v90 = vld [vmem:[%s0 + $0x258] sm:$0xff]
    %v91 = vld [vmem:[%s0 + $0x260] sm:$0xff]
    %v92 = vld [vmem:[%s0 + $0x268] sm:$0xff]
    %v93 = vld [vmem:[%s0 + $0x270] sm:$0xff]
    %v94 = vld [vmem:[%s0 + $0x278] sm:$0xff]
    %v95 = vld [vmem:[%s0 + $0x280] sm:$0xff]
    %v96 = vld [vmem:[%s0 + $0x288] sm:$0xff]
    %v97 = vld [vmem:[%s0 + $0x290] sm:$0xff]
    %v98 = vld [vmem:[%s0 + $0x298] sm:$0xff]
    %v99 = vld [vmem:[%s0 + $0x2a0] sm:$0xff]
    %v100 = vld [vmem:[%s0 + $0x2a8] sm:$0xff]
    %v101 = vld [vmem:[%s0 + $0x2b0] sm:$0xff]
    %v102 = vld [vmem:[%s0 + $0x2b8] sm:$0xff]
    %v103 = vld [vmem:[%s0 + $0x2c0] sm:$0xff]
    %v104 = vld [vmem:[%s0 + $0x2c8] sm:$0xff]
    %v105 = vld [vmem:[%s0 + $0x2d0] sm:$0xff]
    %v106 = vld [vmem:[%s0 + $0x2d8] sm:$0xff]
    %v107 = vld [vmem:[%s0 + $0x2e0] sm:$0xff]
    %v108 = vld [vmem:[%s0 + $0x2e8] sm:$0xff]
    %v109 = vld [vmem:[%s0 + $0x2f0] sm:$0xff]
    %v110 = vld [vmem:[%s0 + $0x2f8] sm:$0xff]
    %v111 = vld [vmem:[%s0 + $0x300] sm:$0xff]
    %v112 = vld [vmem:[%s0 + $0x308] sm:$0xff]
    %v113 = vld [vmem:[%s0 + $0x310] sm:$0xff]
    %v114 = vld [vmem:[%s0 + $0x318] sm:$0xff]
    %v115 = vld [vmem:[%s0 + $0x320] sm:$0xff]
    %v116 = vld [vmem:[%s0 + $0x328] sm:$0xff]
    %v117 = vld [vmem:[%s0 + $0x330] sm:$0xff]
    %v118 = vld [vmem:[%s0 + $0x338] sm:$0xff]
    %v119 = vld [vmem:[%s0 + $0x340] sm:$0xff]
    %v120 = vld [vmem:[%s0 + $0x348] sm:$0xff]
    %v121 = vld [vmem:[%s0 + $0x350] sm:$0xff]
    %v122 = vld [vmem:[%s0 + $0x358] sm:$0xff]
    %v123 = vld [vmem:[%s0 + $0x360] sm:$0xff]
    %v124 = vld [vmem:[%s0 + $0x368] sm:$0xff]
    %v125 = vld [vmem:[%s0 + $0x370] sm:$0xff]
    %v126 = vld [vmem:[%s0 + $0x378] sm:$0xff]
    %v127 = vld [vmem:[%s0 + $0x380] sm:$0xff]
    %v128 = vld [vmem:[%s0 + $0x388] sm:$0xff]
    %v129 = vld [vmem:[%s0 + $0x390] sm:$0xff]
    %v130 = vld [vmem:[%s0 + $0x398] sm:$0xff]
    %v131 = vld [vmem:[%s0 + $0x3a0] sm:$0xff]
    %v132 = vld [vmem:[%s0 + $0x3a8] sm:$0xff]
    %v133 = vld [vmem:[%s0 + $0x3b0] sm:$0xff]
    %v134 = vld [vmem:[%s0 + $0x3b8] sm:$0xff]
    %v135 = vld [vmem:[%s0 + $0x3c0] sm:$0xff]
    %v136 = vld [vmem:[%s0 + $0x3c8] sm:$0xff]
    %v137 = vld [vmem:[%s0 + $0x3d0] sm:$0xff]
    %v138 = vld [vmem:[%s0 + $0x3d8] sm:$0xff]
    %v139 = vld [vmem:[%s0 + $0x3e0] sm:$0xff]
    %v140 = vld [vmem:[%s0 + $0x3e8] sm:$0xff]
    %v141 = vld [vmem:[%s0 + $0x3f0] sm:$0xff]
    %v142 = vld [vmem:[%s0 + $0x3f8] sm:$0xff]
    %vm143 = vcmask 400384
    %v144 = vsel %vm143, %v15, 0.0
    %145 = vadd.xlane.f32.xlu0 %v144
    %v146 = vpop.xlane.xlu0 %145
    %v147 = vsel %vm143, %v16, 0.0
    %148 = vadd.xlane.f32.xlu0 %v147
    %v149 = vpop.xlane.xlu0 %148
    %v150 = vsel %vm143, %v17, 0.0
    %151 = vadd.xlane.f32.xlu0 %v150
    %v152 = vpop.xlane.xlu0 %151
    %v153 = vsel %vm143, %v18, 0.0
    %154 = vadd.xlane.f32.xlu0 %v153
    %v155 = vpop.xlane.xlu0 %154
    %v156 = vsel %vm143, %v19, 0.0
    %157 = vadd.xlane.f32.xlu0 %v156
    %v158 = vpop.xlane.xlu0 %157
    %v159 = vsel %vm143, %v20, 0.0
    %160 = vadd.xlane.f32.xlu0 %v159
    %v161 = vpop.xlane.xlu0 %160
    %v162 = vsel %vm143, %v21, 0.0
    %163 = vadd.xlane.f32.xlu0 %v162
    %v164 = vpop.xlane.xlu0 %163
    %v165 = vsel %vm143, %v22, 0.0
    %166 = vadd.xlane.f32.xlu0 %v165
    %v167 = vpop.xlane.xlu0 %166
    %v168 = vsel %vm143, %v23, 0.0
    %169 = vadd.xlane.f32.xlu0 %v168
    %v170 = vpop.xlane.xlu0 %169
    %v171 = vsel %vm143, %v24, 0.0
    %172 = vadd.xlane.f32.xlu0 %v171
    %v173 = vpop.xlane.xlu0 %172
    %v174 = vsel %vm143, %v25, 0.0
    %175 = vadd.xlane.f32.xlu0 %v174
    %v176 = vpop.xlane.xlu0 %175
    %v177 = vsel %vm143, %v26, 0.0
    %178 = vadd.xlane.f32.xlu0 %v177
    %v179 = vpop.xlane.xlu0 %178
    %v180 = vsel %vm143, %v27, 0.0
    %181 = vadd.xlane.f32.xlu0 %v180
    %v182 = vpop.xlane.xlu0 %181
    %v183 = vsel %vm143, %v28, 0.0
    %184 = vadd.xlane.f32.xlu0 %v183
    %v185 = vpop.xlane.xlu0 %184
    %v186 = vsel %vm143, %v29, 0.0
    %187 = vadd.xlane.f32.xlu0 %v186
    %v188 = vpop.xlane.xlu0 %187
    %v189 = vsel %vm143, %v30, 0.0
    %190 = vadd.xlane.f32.xlu0 %v189
    %v191 = vpop.xlane.xlu0 %190
    %v192 = vsel %vm143, %v31, 0.0
    %193 = vadd.xlane.f32.xlu0 %v192
    %v194 = vpop.xlane.xlu0 %193
    %v195 = vsel %vm143, %v32, 0.0
    %196 = vadd.xlane.f32.xlu0 %v195
    %v197 = vpop.xlane.xlu0 %196
    %v198 = vsel %vm143, %v33, 0.0
    %199 = vadd.xlane.f32.xlu0 %v198
    %v200 = vpop.xlane.xlu0 %199
    %v201 = vsel %vm143, %v34, 0.0
    %202 = vadd.xlane.f32.xlu0 %v201
    %v203 = vpop.xlane.xlu0 %202
    %v204 = vsel %vm143, %v35, 0.0
    %205 = vadd.xlane.f32.xlu0 %v204
    %v206 = vpop.xlane.xlu0 %205
    %v207 = vsel %vm143, %v36, 0.0
    %208 = vadd.xlane.f32.xlu0 %v207
    %v209 = vpop.xlane.xlu0 %208
    %v210 = vsel %vm143, %v37, 0.0
    %211 = vadd.xlane.f32.xlu0 %v210
    %v212 = vpop.xlane.xlu0 %211
    %v213 = vsel %vm143, %v38, 0.0
    %214 = vadd.xlane.f32.xlu0 %v213
    %v215 = vpop.xlane.xlu0 %214
    %v216 = vsel %vm143, %v39, 0.0
    %217 = vadd.xlane.f32.xlu0 %v216
    %v218 = vpop.xlane.xlu0 %217
    %v219 = vsel %vm143, %v40, 0.0
    %220 = vadd.xlane.f32.xlu0 %v219
    %v221 = vpop.xlane.xlu0 %220
    %v222 = vsel %vm143, %v41, 0.0
    %223 = vadd.xlane.f32.xlu0 %v222
    %v224 = vpop.xlane.xlu0 %223
    %v225 = vsel %vm143, %v42, 0.0
    %226 = vadd.xlane.f32.xlu0 %v225
    %v227 = vpop.xlane.xlu0 %226
    %v228 = vsel %vm143, %v43, 0.0
    %229 = vadd.xlane.f32.xlu0 %v228
    %v230 = vpop.xlane.xlu0 %229
    %v231 = vsel %vm143, %v44, 0.0
    %232 = vadd.xlane.f32.xlu0 %v231
    %v233 = vpop.xlane.xlu0 %232
    %v234 = vsel %vm143, %v45, 0.0
    %235 = vadd.xlane.f32.xlu0 %v234
    %v236 = vpop.xlane.xlu0 %235
    %v237 = vsel %vm143, %v46, 0.0
    %238 = vadd.xlane.f32.xlu0 %v237
    %v239 = vpop.xlane.xlu0 %238
    %v240 = vsel %vm143, %v47, 0.0
    %241 = vadd.xlane.f32.xlu0 %v240
    %v242 = vpop.xlane.xlu0 %241
    %v243 = vsel %vm143, %v48, 0.0
    %244 = vadd.xlane.f32.xlu0 %v243
    %v245 = vpop.xlane.xlu0 %244
    %v246 = vsel %vm143, %v49, 0.0
    %247 = vadd.xlane.f32.xlu0 %v246
    %v248 = vpop.xlane.xlu0 %247
    %v249 = vsel %vm143, %v50, 0.0
    %250 = vadd.xlane.f32.xlu0 %v249
    %v251 = vpop.xlane.xlu0 %250
    %v252 = vsel %vm143, %v51, 0.0
    %253 = vadd.xlane.f32.xlu0 %v252
    %v254 = vpop.xlane.xlu0 %253
    %v255 = vsel %vm143, %v52, 0.0
    %256 = vadd.xlane.f32.xlu0 %v255
    %v257 = vpop.xlane.xlu0 %256
    %v258 = vsel %vm143, %v53, 0.0
    %259 = vadd.xlane.f32.xlu0 %v258
    %v260 = vpop.xlane.xlu0 %259
    %v261 = vsel %vm143, %v54, 0.0
    %262 = vadd.xlane.f32.xlu0 %v261
    %v263 = vpop.xlane.xlu0 %262
    %v264 = vsel %vm143, %v55, 0.0
    %265 = vadd.xlane.f32.xlu0 %v264
    %v266 = vpop.xlane.xlu0 %265
    %v267 = vsel %vm143, %v56, 0.0
    %268 = vadd.xlane.f32.xlu0 %v267
    %v269 = vpop.xlane.xlu0 %268
    %v270 = vsel %vm143, %v57, 0.0
    %271 = vadd.xlane.f32.xlu0 %v270
    %v272 = vpop.xlane.xlu0 %271
    %v273 = vsel %vm143, %v58, 0.0
    %274 = vadd.xlane.f32.xlu0 %v273
    %v275 = vpop.xlane.xlu0 %274
    %v276 = vsel %vm143, %v59, 0.0
    %277 = vadd.xlane.f32.xlu0 %v276
    %v278 = vpop.xlane.xlu0 %277
    %v279 = vsel %vm143, %v60, 0.0
    %280 = vadd.xlane.f32.xlu0 %v279
    %v281 = vpop.xlane.xlu0 %280
    %v282 = vsel %vm143, %v61, 0.0
    %283 = vadd.xlane.f32.xlu0 %v282
    %v284 = vpop.xlane.xlu0 %283
    %v285 = vsel %vm143, %v62, 0.0
    %286 = vadd.xlane.f32.xlu0 %v285
    %v287 = vpop.xlane.xlu0 %286
    %v288 = vsel %vm143, %v63, 0.0
    %289 = vadd.xlane.f32.xlu0 %v288
    %v290 = vpop.xlane.xlu0 %289
    %v291 = vsel %vm143, %v64, 0.0
    %292 = vadd.xlane.f32.xlu0 %v291
    %v293 = vpop.xlane.xlu0 %292
    %v294 = vsel %vm143, %v65, 0.0
    %295 = vadd.xlane.f32.xlu0 %v294
    %v296 = vpop.xlane.xlu0 %295
    %v297 = vsel %vm143, %v66, 0.0
    %298 = vadd.xlane.f32.xlu0 %v297
    %v299 = vpop.xlane.xlu0 %298
    %v300 = vsel %vm143, %v67, 0.0
    %301 = vadd.xlane.f32.xlu0 %v300
    %v302 = vpop.xlane.xlu0 %301
    %v303 = vsel %vm143, %v68, 0.0
    %304 = vadd.xlane.f32.xlu0 %v303
    %v305 = vpop.xlane.xlu0 %304
    %v306 = vsel %vm143, %v69, 0.0
    %307 = vadd.xlane.f32.xlu0 %v306
    %v308 = vpop.xlane.xlu0 %307
    %v309 = vsel %vm143, %v70, 0.0
    %310 = vadd.xlane.f32.xlu0 %v309
    %v311 = vpop.xlane.xlu0 %310
    %v312 = vsel %vm143, %v71, 0.0
    %313 = vadd.xlane.f32.xlu0 %v312
    %v314 = vpop.xlane.xlu0 %313
    %v315 = vsel %vm143, %v72, 0.0
    %316 = vadd.xlane.f32.xlu0 %v315
    %v317 = vpop.xlane.xlu0 %316
    %v318 = vsel %vm143, %v73, 0.0
    %319 = vadd.xlane.f32.xlu0 %v318
    %v320 = vpop.xlane.xlu0 %319
    %v321 = vsel %vm143, %v74, 0.0
    %322 = vadd.xlane.f32.xlu0 %v321
    %v323 = vpop.xlane.xlu0 %322
    %v324 = vsel %vm143, %v75, 0.0
    %325 = vadd.xlane.f32.xlu0 %v324
    %v326 = vpop.xlane.xlu0 %325
    %v327 = vsel %vm143, %v76, 0.0
    %328 = vadd.xlane.f32.xlu0 %v327
    %v329 = vpop.xlane.xlu0 %328
    %v330 = vsel %vm143, %v77, 0.0
    %331 = vadd.xlane.f32.xlu0 %v330
    %v332 = vpop.xlane.xlu0 %331
    %v333 = vsel %vm143, %v78, 0.0
    %334 = vadd.xlane.f32.xlu0 %v333
    %v335 = vpop.xlane.xlu0 %334
    %v336 = vsel %vm143, %v79, 0.0
    %337 = vadd.xlane.f32.xlu0 %v336
    %v338 = vpop.xlane.xlu0 %337
    %v339 = vsel %vm143, %v80, 0.0
    %340 = vadd.xlane.f32.xlu0 %v339
    %v341 = vpop.xlane.xlu0 %340
    %v342 = vsel %vm143, %v81, 0.0
    %343 = vadd.xlane.f32.xlu0 %v342
    %v344 = vpop.xlane.xlu0 %343
    %v345 = vsel %vm143, %v82, 0.0
    %346 = vadd.xlane.f32.xlu0 %v345
    %v347 = vpop.xlane.xlu0 %346
    %v348 = vsel %vm143, %v83, 0.0
    %349 = vadd.xlane.f32.xlu0 %v348
    %v350 = vpop.xlane.xlu0 %349
    %v351 = vsel %vm143, %v84, 0.0
    %352 = vadd.xlane.f32.xlu0 %v351
    %v353 = vpop.xlane.xlu0 %352
    %v354 = vsel %vm143, %v85, 0.0
    %355 = vadd.xlane.f32.xlu0 %v354
    %v356 = vpop.xlane.xlu0 %355
    %v357 = vsel %vm143, %v86, 0.0
    %358 = vadd.xlane.f32.xlu0 %v357
    %v359 = vpop.xlane.xlu0 %358
    %v360 = vsel %vm143, %v87, 0.0
    %361 = vadd.xlane.f32.xlu0 %v360
    %v362 = vpop.xlane.xlu0 %361
    %v363 = vsel %vm143, %v88, 0.0
    %364 = vadd.xlane.f32.xlu0 %v363
    %v365 = vpop.xlane.xlu0 %364
    %v366 = vsel %vm143, %v89, 0.0
    %367 = vadd.xlane.f32.xlu0 %v366
    %v368 = vpop.xlane.xlu0 %367
    %v369 = vsel %vm143, %v90, 0.0
    %370 = vadd.xlane.f32.xlu0 %v369
    %v371 = vpop.xlane.xlu0 %370
    %v372 = vsel %vm143, %v91, 0.0
    %373 = vadd.xlane.f32.xlu0 %v372
    %v374 = vpop.xlane.xlu0 %373
    %v375 = vsel %vm143, %v92, 0.0
    %376 = vadd.xlane.f32.xlu0 %v375
    %v377 = vpop.xlane.xlu0 %376
    %v378 = vsel %vm143, %v93, 0.0
    %379 = vadd.xlane.f32.xlu0 %v378
    %v380 = vpop.xlane.xlu0 %379
    %v381 = vsel %vm143, %v94, 0.0
    %382 = vadd.xlane.f32.xlu0 %v381
    %v383 = vpop.xlane.xlu0 %382
    %v384 = vsel %vm143, %v95, 0.0
    %385 = vadd.xlane.f32.xlu0 %v384
    %v386 = vpop.xlane.xlu0 %385
    %v387 = vsel %vm143, %v96, 0.0
    %388 = vadd.xlane.f32.xlu0 %v387
    %v389 = vpop.xlane.xlu0 %388
    %v390 = vsel %vm143, %v97, 0.0
    %391 = vadd.xlane.f32.xlu0 %v390
    %v392 = vpop.xlane.xlu0 %391
    %v393 = vsel %vm143, %v98, 0.0
    %394 = vadd.xlane.f32.xlu0 %v393
    %v395 = vpop.xlane.xlu0 %394
    %v396 = vsel %vm143, %v99, 0.0
    %397 = vadd.xlane.f32.xlu0 %v396
    %v398 = vpop.xlane.xlu0 %397
    %v399 = vsel %vm143, %v100, 0.0
    %400 = vadd.xlane.f32.xlu0 %v399
    %v401 = vpop.xlane.xlu0 %400
    %v402 = vsel %vm143, %v101, 0.0
    %403 = vadd.xlane.f32.xlu0 %v402
    %v404 = vpop.xlane.xlu0 %403
    %v405 = vsel %vm143, %v102, 0.0
    %406 = vadd.xlane.f32.xlu0 %v405
    %v407 = vpop.xlane.xlu0 %406
    %v408 = vsel %vm143, %v103, 0.0
    %409 = vadd.xlane.f32.xlu0 %v408
    %v410 = vpop.xlane.xlu0 %409
    %v411 = vsel %vm143, %v104, 0.0
    %412 = vadd.xlane.f32.xlu0 %v411
    %v413 = vpop.xlane.xlu0 %412
    %v414 = vsel %vm143, %v105, 0.0
    %415 = vadd.xlane.f32.xlu0 %v414
    %v416 = vpop.xlane.xlu0 %415
    %v417 = vsel %vm143, %v106, 0.0
    %418 = vadd.xlane.f32.xlu0 %v417
    %v419 = vpop.xlane.xlu0 %418
    %v420 = vsel %vm143, %v107, 0.0
    %421 = vadd.xlane.f32.xlu0 %v420
    %v422 = vpop.xlane.xlu0 %421
    %v423 = vsel %vm143, %v108, 0.0
    %424 = vadd.xlane.f32.xlu0 %v423
    %v425 = vpop.xlane.xlu0 %424
    %v426 = vsel %vm143, %v109, 0.0
    %427 = vadd.xlane.f32.xlu0 %v426
    %v428 = vpop.xlane.xlu0 %427
    %v429 = vsel %vm143, %v110, 0.0
    %430 = vadd.xlane.f32.xlu0 %v429
    %v431 = vpop.xlane.xlu0 %430
    %v432 = vsel %vm143, %v111, 0.0
    %433 = vadd.xlane.f32.xlu0 %v432
    %v434 = vpop.xlane.xlu0 %433
    %v435 = vsel %vm143, %v112, 0.0
    %436 = vadd.xlane.f32.xlu0 %v435
    %v437 = vpop.xlane.xlu0 %436
    %v438 = vsel %vm143, %v113, 0.0
    %439 = vadd.xlane.f32.xlu0 %v438
    %v440 = vpop.xlane.xlu0 %439
    %v441 = vsel %vm143, %v114, 0.0
    %442 = vadd.xlane.f32.xlu0 %v441
    %v443 = vpop.xlane.xlu0 %442
    %v444 = vsel %vm143, %v115, 0.0
    %445 = vadd.xlane.f32.xlu0 %v444
    %v446 = vpop.xlane.xlu0 %445
    %v447 = vsel %vm143, %v116, 0.0
    %448 = vadd.xlane.f32.xlu0 %v447
    %v449 = vpop.xlane.xlu0 %448
    %v450 = vsel %vm143, %v117, 0.0
    %451 = vadd.xlane.f32.xlu0 %v450
    %v452 = vpop.xlane.xlu0 %451
    %v453 = vsel %vm143, %v118, 0.0
    %454 = vadd.xlane.f32.xlu0 %v453
    %v455 = vpop.xlane.xlu0 %454
    %v456 = vsel %vm143, %v119, 0.0
    %457 = vadd.xlane.f32.xlu0 %v456
    %v458 = vpop.xlane.xlu0 %457
    %v459 = vsel %vm143, %v120, 0.0
    %460 = vadd.xlane.f32.xlu0 %v459
    %v461 = vpop.xlane.xlu0 %460
    %v462 = vsel %vm143, %v121, 0.0
    %463 = vadd.xlane.f32.xlu0 %v462
    %v464 = vpop.xlane.xlu0 %463
    %v465 = vsel %vm143, %v122, 0.0
    %466 = vadd.xlane.f32.xlu0 %v465
    %v467 = vpop.xlane.xlu0 %466
    %v468 = vsel %vm143, %v123, 0.0
    %469 = vadd.xlane.f32.xlu0 %v468
    %v470 = vpop.xlane.xlu0 %469
    %v471 = vsel %vm143, %v124, 0.0
    %472 = vadd.xlane.f32.xlu0 %v471
    %v473 = vpop.xlane.xlu0 %472
    %v474 = vsel %vm143, %v125, 0.0
    %475 = vadd.xlane.f32.xlu0 %v474
    %v476 = vpop.xlane.xlu0 %475
    %v477 = vsel %vm143, %v126, 0.0
    %478 = vadd.xlane.f32.xlu0 %v477
    %v479 = vpop.xlane.xlu0 %478
    %v480 = vsel %vm143, %v127, 0.0
    %481 = vadd.xlane.f32.xlu0 %v480
    %v482 = vpop.xlane.xlu0 %481
    %v483 = vsel %vm143, %v128, 0.0
    %484 = vadd.xlane.f32.xlu0 %v483
    %v485 = vpop.xlane.xlu0 %484
    %v486 = vsel %vm143, %v129, 0.0
    %487 = vadd.xlane.f32.xlu0 %v486
    %v488 = vpop.xlane.xlu0 %487
    %v489 = vsel %vm143, %v130, 0.0
    %490 = vadd.xlane.f32.xlu0 %v489
    %v491 = vpop.xlane.xlu0 %490
    %v492 = vsel %vm143, %v131, 0.0
    %493 = vadd.xlane.f32.xlu0 %v492
    %v494 = vpop.xlane.xlu0 %493
    %v495 = vsel %vm143, %v132, 0.0
    %496 = vadd.xlane.f32.xlu0 %v495
    %v497 = vpop.xlane.xlu0 %496
    %v498 = vsel %vm143, %v133, 0.0
    %499 = vadd.xlane.f32.xlu0 %v498
    %v500 = vpop.xlane.xlu0 %499
    %v501 = vsel %vm143, %v134, 0.0
    %502 = vadd.xlane.f32.xlu0 %v501
    %v503 = vpop.xlane.xlu0 %502
    %v504 = vsel %vm143, %v135, 0.0
    %505 = vadd.xlane.f32.xlu0 %v504
    %v506 = vpop.xlane.xlu0 %505
    %v507 = vsel %vm143, %v136, 0.0
    %508 = vadd.xlane.f32.xlu0 %v507
    %v509 = vpop.xlane.xlu0 %508
    %v510 = vsel %vm143, %v137, 0.0
    %511 = vadd.xlane.f32.xlu0 %v510
    %v512 = vpop.xlane.xlu0 %511
    %v513 = vsel %vm143, %v138, 0.0
    %514 = vadd.xlane.f32.xlu0 %v513
    %v515 = vpop.xlane.xlu0 %514
    %v516 = vsel %vm143, %v139, 0.0
    %517 = vadd.xlane.f32.xlu0 %v516
    %v518 = vpop.xlane.xlu0 %517
    %v519 = vsel %vm143, %v140, 0.0
    %520 = vadd.xlane.f32.xlu0 %v519
    %v521 = vpop.xlane.xlu0 %520
    %v522 = vsel %vm143, %v141, 0.0
    %523 = vadd.xlane.f32.xlu0 %v522
    %v524 = vpop.xlane.xlu0 %523
    %v525 = vsel %vm143, %v142, 0.0
    %526 = vadd.xlane.f32.xlu0 %v525
    %v527 = vpop.xlane.xlu0 %526
    %v528 = vld [vmem:[%s1] sm:$0xff]
    %v529 = vld [vmem:[%s1 + $0x8] sm:$0xff]
    %v530 = vld [vmem:[%s1 + $0x10] sm:$0xff]
    %v531 = vld [vmem:[%s1 + $0x18] sm:$0xff]
    %v532 = vld [vmem:[%s1 + $0x20] sm:$0xff]
    %v533 = vld [vmem:[%s1 + $0x28] sm:$0xff]
    %v534 = vld [vmem:[%s1 + $0x30] sm:$0xff]
    %v535 = vld [vmem:[%s1 + $0x38] sm:$0xff]
    %v536 = vld [vmem:[%s1 + $0x40] sm:$0xff]
    %v537 = vld [vmem:[%s1 + $0x48] sm:$0xff]
    %v538 = vld [vmem:[%s1 + $0x50] sm:$0xff]
    %v539 = vld [vmem:[%s1 + $0x58] sm:$0xff]
    %v540 = vld [vmem:[%s1 + $0x60] sm:$0xff]
    %v541 = vld [vmem:[%s1 + $0x68] sm:$0xff]
    %v542 = vld [vmem:[%s1 + $0x70] sm:$0xff]
    %v543 = vld [vmem:[%s1 + $0x78] sm:$0xff]
    %v544 = vld [vmem:[%s2] sm:$0x1]
    %v546 = vlaneseq
    %v547 = vshrl.u32 %v546, 7
    %v548 = vsub.s32 0, %v547
    %v549 = vrot.slane %v544, %v548
    %v679 = vlaneseq
    %v680 = vand.u32 %v679, 127
    %v681 = vlaneseq
    %v682 = vshrl.u32 %v681, 7
    %v683 = vsub.s32 %v680, %v682
    %v684 = vrot.slane %v146, %v683
    %v685 = vadd.s32 %v680, 4294967288
    %v686 = vlaneseq
    %v687 = vshrl.u32 %v686, 7
    %v688 = vsub.s32 %v685, %v687
    %v689 = vrot.slane %v149, %v688
    %vm690 = vcmask 130112
    %v691 = vsel %vm690, %v689, %v684
    %v692 = vadd.s32 %v680, 4294967280
    %v693 = vlaneseq
    %v694 = vshrl.u32 %v693, 7
    %v695 = vsub.s32 %v692, %v694
    %v696 = vrot.slane %v152, %v695
    %vm697 = vcmask 195712
    %v698 = vsel %vm697, %v696, %v691
    %v699 = vadd.s32 %v680, 4294967272
    %v700 = vlaneseq
    %v701 = vshrl.u32 %v700, 7
    %v702 = vsub.s32 %v699, %v701
    %v703 = vrot.slane %v155, %v702
    %vm704 = vcmask 261312
    %v705 = vsel %vm704, %v703, %v698
    %v706 = vadd.s32 %v680, 4294967264
    %v707 = vlaneseq
    %v708 = vshrl.u32 %v707, 7
    %v709 = vsub.s32 %v706, %v708
    %v710 = vrot.slane %v158, %v709
    %vm711 = vcmask 326912
    %v712 = vsel %vm711, %v710, %v705
    %v713 = vadd.s32 %v680, 4294967256
    %v714 = vlaneseq
    %v715 = vshrl.u32 %v714, 7
    %v716 = vsub.s32 %v713, %v715
    %v717 = vrot.slane %v161, %v716
    %vm718 = vcmask 392512
    %v719 = vsel %vm718, %v717, %v712
    %v720 = vadd.s32 %v680, 4294967248
    %v721 = vlaneseq
    %v722 = vshrl.u32 %v721, 7
    %v723 = vsub.s32 %v720, %v722
    %v724 = vrot.slane %v164, %v723
    %vm725 = vcmask 458112
    %v726 = vsel %vm725, %v724, %v719
    %v727 = vadd.s32 %v680, 4294967240
    %v728 = vlaneseq
    %v729 = vshrl.u32 %v728, 7
    %v730 = vsub.s32 %v727, %v729
    %v731 = vrot.slane %v167, %v730
    %vm732 = vcmask 523712
    %v733 = vsel %vm732, %v731, %v726
    %v734 = vadd.s32 %v680, 4294967232
    %v735 = vlaneseq
    %v736 = vshrl.u32 %v735, 7
    %v737 = vsub.s32 %v734, %v736
    %v738 = vrot.slane %v170, %v737
    %vm739 = vcmask 589312
    %v740 = vsel %vm739, %v738, %v733
    %v741 = vadd.s32 %v680, 4294967224
    %v742 = vlaneseq
    %v743 = vshrl.u32 %v742, 7
    %v744 = vsub.s32 %v741, %v743
    %v745 = vrot.slane %v173, %v744
    %vm746 = vcmask 654912
    %v747 = vsel %vm746, %v745, %v740
    %v748 = vadd.s32 %v680, 4294967216
    %v749 = vlaneseq
    %v750 = vshrl.u32 %v749, 7
    %v751 = vsub.s32 %v748, %v750
    %v752 = vrot.slane %v176, %v751
    %vm753 = vcmask 720512
    %v754 = vsel %vm753, %v752, %v747
    %v755 = vadd.s32 %v680, 4294967208
    %v756 = vlaneseq
    %v757 = vshrl.u32 %v756, 7
    %v758 = vsub.s32 %v755, %v757
    %v759 = vrot.slane %v179, %v758
    %vm760 = vcmask 786112
    %v761 = vsel %vm760, %v759, %v754
    %v762 = vadd.s32 %v680, 4294967200
    %v763 = vlaneseq
    %v764 = vshrl.u32 %v763, 7
    %v765 = vsub.s32 %v762, %v764
    %v766 = vrot.slane %v182, %v765
    %vm767 = vcmask 851712
    %v768 = vsel %vm767, %v766, %v761
    %v769 = vadd.s32 %v680, 4294967192
    %v770 = vlaneseq
    %v771 = vshrl.u32 %v770, 7
    %v772 = vsub.s32 %v769, %v771
    %v773 = vrot.slane %v185, %v772
    %vm774 = vcmask 917312
    %v775 = vsel %vm774, %v773, %v768
    %v776 = vadd.s32 %v680, 4294967184
    %v777 = vlaneseq
    %v778 = vshrl.u32 %v777, 7
    %v779 = vsub.s32 %v776, %v778
    %v780 = vrot.slane %v188, %v779
    %vm781 = vcmask 982912
    %v782 = vsel %vm781, %v780, %v775
    %v783 = vadd.s32 %v680, 4294967176
    %v784 = vlaneseq
    %v785 = vshrl.u32 %v784, 7
    %v786 = vsub.s32 %v783, %v785
    %v787 = vrot.slane %v191, %v786
    %vm788 = vcmask 1048512
    %v789 = vsel %vm788, %v787, %v782
    %v790 = vlaneseq
    %v791 = vshrl.u32 %v790, 7
    %v792 = vsub.s32 %v680, %v791
    %v793 = vrot.slane %v194, %v792
    %v794 = vlaneseq
    %v795 = vshrl.u32 %v794, 7
    %v796 = vsub.s32 %v685, %v795
    %v797 = vrot.slane %v197, %v796
    %v798 = vsel %vm690, %v797, %v793
    %v799 = vlaneseq
    %v800 = vshrl.u32 %v799, 7
    %v801 = vsub.s32 %v692, %v800
    %v802 = vrot.slane %v200, %v801
    %v803 = vsel %vm697, %v802, %v798
    %v804 = vlaneseq
    %v805 = vshrl.u32 %v804, 7
    %v806 = vsub.s32 %v699, %v805
    %v807 = vrot.slane %v203, %v806
    %v808 = vsel %vm704, %v807, %v803
    %v809 = vlaneseq
    %v810 = vshrl.u32 %v809, 7
    %v811 = vsub.s32 %v706, %v810
    %v812 = vrot.slane %v206, %v811
    %v813 = vsel %vm711, %v812, %v808
    %v814 = vlaneseq
    %v815 = vshrl.u32 %v814, 7
    %v816 = vsub.s32 %v713, %v815
    %v817 = vrot.slane %v209, %v816
    %v818 = vsel %vm718, %v817, %v813
    %v819 = vlaneseq
    %v820 = vshrl.u32 %v819, 7
    %v821 = vsub.s32 %v720, %v820
    %v822 = vrot.slane %v212, %v821
    %v823 = vsel %vm725, %v822, %v818
    %v824 = vlaneseq
    %v825 = vshrl.u32 %v824, 7
    %v826 = vsub.s32 %v727, %v825
    %v827 = vrot.slane %v215, %v826
    %v828 = vsel %vm732, %v827, %v823
    %v829 = vlaneseq
    %v830 = vshrl.u32 %v829, 7
    %v831 = vsub.s32 %v734, %v830
    %v832 = vrot.slane %v218, %v831
    %v833 = vsel %vm739, %v832, %v828
    %v834 = vlaneseq
    %v835 = vshrl.u32 %v834, 7
    %v836 = vsub.s32 %v741, %v835
    %v837 = vrot.slane %v221, %v836
    %v838 = vsel %vm746, %v837, %v833
    %v839 = vlaneseq
    %v840 = vshrl.u32 %v839, 7
    %v841 = vsub.s32 %v748, %v840
    %v842 = vrot.slane %v224, %v841
    %v843 = vsel %vm753, %v842, %v838
    %v844 = vlaneseq
    %v845 = vshrl.u32 %v844, 7
    %v846 = vsub.s32 %v755, %v845
    %v847 = vrot.slane %v227, %v846
    %v848 = vsel %vm760, %v847, %v843
    %v849 = vlaneseq
    %v850 = vshrl.u32 %v849, 7
    %v851 = vsub.s32 %v762, %v850
    %v852 = vrot.slane %v230, %v851
    %v853 = vsel %vm767, %v852, %v848
    %v854 = vlaneseq
    %v855 = vshrl.u32 %v854, 7
    %v856 = vsub.s32 %v769, %v855
    %v857 = vrot.slane %v233, %v856
    %v858 = vsel %vm774, %v857, %v853
    %v859 = vlaneseq
    %v860 = vshrl.u32 %v859, 7
    %v861 = vsub.s32 %v776, %v860
    %v862 = vrot.slane %v236, %v861
    %v863 = vsel %vm781, %v862, %v858
    %v864 = vlaneseq
    %v865 = vshrl.u32 %v864, 7
    %v866 = vsub.s32 %v783, %v865
    %v867 = vrot.slane %v239, %v866
    %v868 = vsel %vm788, %v867, %v863
    %v869 = vlaneseq
    %v870 = vshrl.u32 %v869, 7
    %v871 = vsub.s32 %v680, %v870
    %v872 = vrot.slane %v242, %v871
    %v873 = vlaneseq
    %v874 = vshrl.u32 %v873, 7
    %v875 = vsub.s32 %v685, %v874
    %v876 = vrot.slane %v245, %v875
    %v877 = vsel %vm690, %v876, %v872
    %v878 = vlaneseq
    %v879 = vshrl.u32 %v878, 7
    %v880 = vsub.s32 %v692, %v879
    %v881 = vrot.slane %v248, %v880
    %v882 = vsel %vm697, %v881, %v877
    %v883 = vlaneseq
    %v884 = vshrl.u32 %v883, 7
    %v885 = vsub.s32 %v699, %v884
    %v886 = vrot.slane %v251, %v885
    %v887 = vsel %vm704, %v886, %v882
    %v888 = vlaneseq
    %v889 = vshrl.u32 %v888, 7
    %v890 = vsub.s32 %v706, %v889
    %v891 = vrot.slane %v254, %v890
    %v892 = vsel %vm711, %v891, %v887
    %v893 = vlaneseq
    %v894 = vshrl.u32 %v893, 7
    %v895 = vsub.s32 %v713, %v894
    %v896 = vrot.slane %v257, %v895
    %v897 = vsel %vm718, %v896, %v892
    %v898 = vlaneseq
    %v899 = vshrl.u32 %v898, 7
    %v900 = vsub.s32 %v720, %v899
    %v901 = vrot.slane %v260, %v900
    %v902 = vsel %vm725, %v901, %v897
    %v903 = vlaneseq
    %v904 = vshrl.u32 %v903, 7
    %v905 = vsub.s32 %v727, %v904
    %v906 = vrot.slane %v263, %v905
    %v907 = vsel %vm732, %v906, %v902
    %v908 = vlaneseq
    %v909 = vshrl.u32 %v908, 7
    %v910 = vsub.s32 %v734, %v909
    %v911 = vrot.slane %v266, %v910
    %v912 = vsel %vm739, %v911, %v907
    %v913 = vlaneseq
    %v914 = vshrl.u32 %v913, 7
    %v915 = vsub.s32 %v741, %v914
    %v916 = vrot.slane %v269, %v915
    %v917 = vsel %vm746, %v916, %v912
    %v918 = vlaneseq
    %v919 = vshrl.u32 %v918, 7
    %v920 = vsub.s32 %v748, %v919
    %v921 = vrot.slane %v272, %v920
    %v922 = vsel %vm753, %v921, %v917
    %v923 = vlaneseq
    %v924 = vshrl.u32 %v923, 7
    %v925 = vsub.s32 %v755, %v924
    %v926 = vrot.slane %v275, %v925
    %v927 = vsel %vm760, %v926, %v922
    %v928 = vlaneseq
    %v929 = vshrl.u32 %v928, 7
    %v930 = vsub.s32 %v762, %v929
    %v931 = vrot.slane %v278, %v930
    %v932 = vsel %vm767, %v931, %v927
    %v933 = vlaneseq
    %v934 = vshrl.u32 %v933, 7
    %v935 = vsub.s32 %v769, %v934
    %v936 = vrot.slane %v281, %v935
    %v937 = vsel %vm774, %v936, %v932
    %v938 = vlaneseq
    %v939 = vshrl.u32 %v938, 7
    %v940 = vsub.s32 %v776, %v939
    %v941 = vrot.slane %v284, %v940
    %v942 = vsel %vm781, %v941, %v937
    %v943 = vlaneseq
    %v944 = vshrl.u32 %v943, 7
    %v945 = vsub.s32 %v783, %v944
    %v946 = vrot.slane %v287, %v945
    %v947 = vsel %vm788, %v946, %v942
    %v948 = vlaneseq
    %v949 = vshrl.u32 %v948, 7
    %v950 = vsub.s32 %v680, %v949
    %v951 = vrot.slane %v290, %v950
    %v952 = vlaneseq
    %v953 = vshrl.u32 %v952, 7
    %v954 = vsub.s32 %v685, %v953
    %v955 = vrot.slane %v293, %v954
    %v956 = vsel %vm690, %v955, %v951
    %v957 = vlaneseq
    %v958 = vshrl.u32 %v957, 7
    %v959 = vsub.s32 %v692, %v958
    %v960 = vrot.slane %v296, %v959
    %v961 = vsel %vm697, %v960, %v956
    %v962 = vlaneseq
    %v963 = vshrl.u32 %v962, 7
    %v964 = vsub.s32 %v699, %v963
    %v965 = vrot.slane %v299, %v964
    %v966 = vsel %vm704, %v965, %v961
    %v967 = vlaneseq
    %v968 = vshrl.u32 %v967, 7
    %v969 = vsub.s32 %v706, %v968
    %v970 = vrot.slane %v302, %v969
    %v971 = vsel %vm711, %v970, %v966
    %v972 = vlaneseq
    %v973 = vshrl.u32 %v972, 7
    %v974 = vsub.s32 %v713, %v973
    %v975 = vrot.slane %v305, %v974
    %v976 = vsel %vm718, %v975, %v971
    %v977 = vlaneseq
    %v978 = vshrl.u32 %v977, 7
    %v979 = vsub.s32 %v720, %v978
    %v980 = vrot.slane %v308, %v979
    %v981 = vsel %vm725, %v980, %v976
    %v982 = vlaneseq
    %v983 = vshrl.u32 %v982, 7
    %v984 = vsub.s32 %v727, %v983
    %v985 = vrot.slane %v311, %v984
    %v986 = vsel %vm732, %v985, %v981
    %v987 = vlaneseq
    %v988 = vshrl.u32 %v987, 7
    %v989 = vsub.s32 %v734, %v988
    %v990 = vrot.slane %v314, %v989
    %v991 = vsel %vm739, %v990, %v986
    %v992 = vlaneseq
    %v993 = vshrl.u32 %v992, 7
    %v994 = vsub.s32 %v741, %v993
    %v995 = vrot.slane %v317, %v994
    %v996 = vsel %vm746, %v995, %v991
    %v997 = vlaneseq
    %v998 = vshrl.u32 %v997, 7
    %v999 = vsub.s32 %v748, %v998
    %v1000 = vrot.slane %v320, %v999
    %v1001 = vsel %vm753, %v1000, %v996
    %v1002 = vlaneseq
    %v1003 = vshrl.u32 %v1002, 7
    %v1004 = vsub.s32 %v755, %v1003
    %v1005 = vrot.slane %v323, %v1004
    %v1006 = vsel %vm760, %v1005, %v1001
    %v1007 = vlaneseq
    %v1008 = vshrl.u32 %v1007, 7
    %v1009 = vsub.s32 %v762, %v1008
    %v1010 = vrot.slane %v326, %v1009
    %v1011 = vsel %vm767, %v1010, %v1006
    %v1012 = vlaneseq
    %v1013 = vshrl.u32 %v1012, 7
    %v1014 = vsub.s32 %v769, %v1013
    %v1015 = vrot.slane %v329, %v1014
    %v1016 = vsel %vm774, %v1015, %v1011
    %v1017 = vlaneseq
    %v1018 = vshrl.u32 %v1017, 7
    %v1019 = vsub.s32 %v776, %v1018
    %v1020 = vrot.slane %v332, %v1019
    %v1021 = vsel %vm781, %v1020, %v1016
    %v1022 = vlaneseq
    %v1023 = vshrl.u32 %v1022, 7
    %v1024 = vsub.s32 %v783, %v1023
    %v1025 = vrot.slane %v335, %v1024
    %v1026 = vsel %vm788, %v1025, %v1021
    %v1027 = vlaneseq
    %v1028 = vshrl.u32 %v1027, 7
    %v1029 = vsub.s32 %v680, %v1028
    %v1030 = vrot.slane %v338, %v1029
    %v1031 = vlaneseq
    %v1032 = vshrl.u32 %v1031, 7
    %v1033 = vsub.s32 %v685, %v1032
    %v1034 = vrot.slane %v341, %v1033
    %v1035 = vsel %vm690, %v1034, %v1030
    %v1036 = vlaneseq
    %v1037 = vshrl.u32 %v1036, 7
    %v1038 = vsub.s32 %v692, %v1037
    %v1039 = vrot.slane %v344, %v1038
    %v1040 = vsel %vm697, %v1039, %v1035
    %v1041 = vlaneseq
    %v1042 = vshrl.u32 %v1041, 7
    %v1043 = vsub.s32 %v699, %v1042
    %v1044 = vrot.slane %v347, %v1043
    %v1045 = vsel %vm704, %v1044, %v1040
    %v1046 = vlaneseq
    %v1047 = vshrl.u32 %v1046, 7
    %v1048 = vsub.s32 %v706, %v1047
    %v1049 = vrot.slane %v350, %v1048
    %v1050 = vsel %vm711, %v1049, %v1045
    %v1051 = vlaneseq
    %v1052 = vshrl.u32 %v1051, 7
    %v1053 = vsub.s32 %v713, %v1052
    %v1054 = vrot.slane %v353, %v1053
    %v1055 = vsel %vm718, %v1054, %v1050
    %v1056 = vlaneseq
    %v1057 = vshrl.u32 %v1056, 7
    %v1058 = vsub.s32 %v720, %v1057
    %v1059 = vrot.slane %v356, %v1058
    %v1060 = vsel %vm725, %v1059, %v1055
    %v1061 = vlaneseq
    %v1062 = vshrl.u32 %v1061, 7
    %v1063 = vsub.s32 %v727, %v1062
    %v1064 = vrot.slane %v359, %v1063
    %v1065 = vsel %vm732, %v1064, %v1060
    %v1066 = vlaneseq
    %v1067 = vshrl.u32 %v1066, 7
    %v1068 = vsub.s32 %v734, %v1067
    %v1069 = vrot.slane %v362, %v1068
    %v1070 = vsel %vm739, %v1069, %v1065
    %v1071 = vlaneseq
    %v1072 = vshrl.u32 %v1071, 7
    %v1073 = vsub.s32 %v741, %v1072
    %v1074 = vrot.slane %v365, %v1073
    %v1075 = vsel %vm746, %v1074, %v1070
    %v1076 = vlaneseq
    %v1077 = vshrl.u32 %v1076, 7
    %v1078 = vsub.s32 %v748, %v1077
    %v1079 = vrot.slane %v368, %v1078
    %v1080 = vsel %vm753, %v1079, %v1075
    %v1081 = vlaneseq
    %v1082 = vshrl.u32 %v1081, 7
    %v1083 = vsub.s32 %v755, %v1082
    %v1084 = vrot.slane %v371, %v1083
    %v1085 = vsel %vm760, %v1084, %v1080
    %v1086 = vlaneseq
    %v1087 = vshrl.u32 %v1086, 7
    %v1088 = vsub.s32 %v762, %v1087
    %v1089 = vrot.slane %v374, %v1088
    %v1090 = vsel %vm767, %v1089, %v1085
    %v1091 = vlaneseq
    %v1092 = vshrl.u32 %v1091, 7
    %v1093 = vsub.s32 %v769, %v1092
    %v1094 = vrot.slane %v377, %v1093
    %v1095 = vsel %vm774, %v1094, %v1090
    %v1096 = vlaneseq
    %v1097 = vshrl.u32 %v1096, 7
    %v1098 = vsub.s32 %v776, %v1097
    %v1099 = vrot.slane %v380, %v1098
    %v1100 = vsel %vm781, %v1099, %v1095
    %v1101 = vlaneseq
    %v1102 = vshrl.u32 %v1101, 7
    %v1103 = vsub.s32 %v783, %v1102
    %v1104 = vrot.slane %v383, %v1103
    %v1105 = vsel %vm788, %v1104, %v1100
    %v1106 = vlaneseq
    %v1107 = vshrl.u32 %v1106, 7
    %v1108 = vsub.s32 %v680, %v1107
    %v1109 = vrot.slane %v386, %v1108
    %v1110 = vlaneseq
    %v1111 = vshrl.u32 %v1110, 7
    %v1112 = vsub.s32 %v685, %v1111
    %v1113 = vrot.slane %v389, %v1112
    %v1114 = vsel %vm690, %v1113, %v1109
    %v1115 = vlaneseq
    %v1116 = vshrl.u32 %v1115, 7
    %v1117 = vsub.s32 %v692, %v1116
    %v1118 = vrot.slane %v392, %v1117
    %v1119 = vsel %vm697, %v1118, %v1114
    %v1120 = vlaneseq
    %v1121 = vshrl.u32 %v1120, 7
    %v1122 = vsub.s32 %v699, %v1121
    %v1123 = vrot.slane %v395, %v1122
    %v1124 = vsel %vm704, %v1123, %v1119
    %v1125 = vlaneseq
    %v1126 = vshrl.u32 %v1125, 7
    %v1127 = vsub.s32 %v706, %v1126
    %v1128 = vrot.slane %v398, %v1127
    %v1129 = vsel %vm711, %v1128, %v1124
    %v1130 = vlaneseq
    %v1131 = vshrl.u32 %v1130, 7
    %v1132 = vsub.s32 %v713, %v1131
    %v1133 = vrot.slane %v401, %v1132
    %v1134 = vsel %vm718, %v1133, %v1129
    %v1135 = vlaneseq
    %v1136 = vshrl.u32 %v1135, 7
    %v1137 = vsub.s32 %v720, %v1136
    %v1138 = vrot.slane %v404, %v1137
    %v1139 = vsel %vm725, %v1138, %v1134
    %v1140 = vlaneseq
    %v1141 = vshrl.u32 %v1140, 7
    %v1142 = vsub.s32 %v727, %v1141
    %v1143 = vrot.slane %v407, %v1142
    %v1144 = vsel %vm732, %v1143, %v1139
    %v1145 = vlaneseq
    %v1146 = vshrl.u32 %v1145, 7
    %v1147 = vsub.s32 %v734, %v1146
    %v1148 = vrot.slane %v410, %v1147
    %v1149 = vsel %vm739, %v1148, %v1144
    %v1150 = vlaneseq
    %v1151 = vshrl.u32 %v1150, 7
    %v1152 = vsub.s32 %v741, %v1151
    %v1153 = vrot.slane %v413, %v1152
    %v1154 = vsel %vm746, %v1153, %v1149
    %v1155 = vlaneseq
    %v1156 = vshrl.u32 %v1155, 7
    %v1157 = vsub.s32 %v748, %v1156
    %v1158 = vrot.slane %v416, %v1157
    %v1159 = vsel %vm753, %v1158, %v1154
    %v1160 = vlaneseq
    %v1161 = vshrl.u32 %v1160, 7
    %v1162 = vsub.s32 %v755, %v1161
    %v1163 = vrot.slane %v419, %v1162
    %v1164 = vsel %vm760, %v1163, %v1159
    %v1165 = vlaneseq
    %v1166 = vshrl.u32 %v1165, 7
    %v1167 = vsub.s32 %v762, %v1166
    %v1168 = vrot.slane %v422, %v1167
    %v1169 = vsel %vm767, %v1168, %v1164
    %v1170 = vlaneseq
    %v1171 = vshrl.u32 %v1170, 7
    %v1172 = vsub.s32 %v769, %v1171
    %v1173 = vrot.slane %v425, %v1172
    %v1174 = vsel %vm774, %v1173, %v1169
    %v1175 = vlaneseq
    %v1176 = vshrl.u32 %v1175, 7
    %v1177 = vsub.s32 %v776, %v1176
    %v1178 = vrot.slane %v428, %v1177
    %v1179 = vsel %vm781, %v1178, %v1174
    %v1180 = vlaneseq
    %v1181 = vshrl.u32 %v1180, 7
    %v1182 = vsub.s32 %v783, %v1181
    %v1183 = vrot.slane %v431, %v1182
    %v1184 = vsel %vm788, %v1183, %v1179
    %v1185 = vlaneseq
    %v1186 = vshrl.u32 %v1185, 7
    %v1187 = vsub.s32 %v680, %v1186
    %v1188 = vrot.slane %v434, %v1187
    %v1189 = vlaneseq
    %v1190 = vshrl.u32 %v1189, 7
    %v1191 = vsub.s32 %v685, %v1190
    %v1192 = vrot.slane %v437, %v1191
    %v1193 = vsel %vm690, %v1192, %v1188
    %v1194 = vlaneseq
    %v1195 = vshrl.u32 %v1194, 7
    %v1196 = vsub.s32 %v692, %v1195
    %v1197 = vrot.slane %v440, %v1196
    %v1198 = vsel %vm697, %v1197, %v1193
    %v1199 = vlaneseq
    %v1200 = vshrl.u32 %v1199, 7
    %v1201 = vsub.s32 %v699, %v1200
    %v1202 = vrot.slane %v443, %v1201
    %v1203 = vsel %vm704, %v1202, %v1198
    %v1204 = vlaneseq
    %v1205 = vshrl.u32 %v1204, 7
    %v1206 = vsub.s32 %v706, %v1205
    %v1207 = vrot.slane %v446, %v1206
    %v1208 = vsel %vm711, %v1207, %v1203
    %v1209 = vlaneseq
    %v1210 = vshrl.u32 %v1209, 7
    %v1211 = vsub.s32 %v713, %v1210
    %v1212 = vrot.slane %v449, %v1211
    %v1213 = vsel %vm718, %v1212, %v1208
    %v1214 = vlaneseq
    %v1215 = vshrl.u32 %v1214, 7
    %v1216 = vsub.s32 %v720, %v1215
    %v1217 = vrot.slane %v452, %v1216
    %v1218 = vsel %vm725, %v1217, %v1213
    %v1219 = vlaneseq
    %v1220 = vshrl.u32 %v1219, 7
    %v1221 = vsub.s32 %v727, %v1220
    %v1222 = vrot.slane %v455, %v1221
    %v1223 = vsel %vm732, %v1222, %v1218
    %v1224 = vlaneseq
    %v1225 = vshrl.u32 %v1224, 7
    %v1226 = vsub.s32 %v734, %v1225
    %v1227 = vrot.slane %v458, %v1226
    %v1228 = vsel %vm739, %v1227, %v1223
    %v1229 = vlaneseq
    %v1230 = vshrl.u32 %v1229, 7
    %v1231 = vsub.s32 %v741, %v1230
    %v1232 = vrot.slane %v461, %v1231
    %v1233 = vsel %vm746, %v1232, %v1228
    %v1234 = vlaneseq
    %v1235 = vshrl.u32 %v1234, 7
    %v1236 = vsub.s32 %v748, %v1235
    %v1237 = vrot.slane %v464, %v1236
    %v1238 = vsel %vm753, %v1237, %v1233
    %v1239 = vlaneseq
    %v1240 = vshrl.u32 %v1239, 7
    %v1241 = vsub.s32 %v755, %v1240
    %v1242 = vrot.slane %v467, %v1241
    %v1243 = vsel %vm760, %v1242, %v1238
    %v1244 = vlaneseq
    %v1245 = vshrl.u32 %v1244, 7
    %v1246 = vsub.s32 %v762, %v1245
    %v1247 = vrot.slane %v470, %v1246
    %v1248 = vsel %vm767, %v1247, %v1243
    %v1249 = vlaneseq
    %v1250 = vshrl.u32 %v1249, 7
    %v1251 = vsub.s32 %v769, %v1250
    %v1252 = vrot.slane %v473, %v1251
    %v1253 = vsel %vm774, %v1252, %v1248
    %v1254 = vlaneseq
    %v1255 = vshrl.u32 %v1254, 7
    %v1256 = vsub.s32 %v776, %v1255
    %v1257 = vrot.slane %v476, %v1256
    %v1258 = vsel %vm781, %v1257, %v1253
    %v1259 = vlaneseq
    %v1260 = vshrl.u32 %v1259, 7
    %v1261 = vsub.s32 %v783, %v1260
    %v1262 = vrot.slane %v479, %v1261
    %v1263 = vsel %vm788, %v1262, %v1258
    %v1264 = vlaneseq
    %v1265 = vshrl.u32 %v1264, 7
    %v1266 = vsub.s32 %v680, %v1265
    %v1267 = vrot.slane %v482, %v1266
    %v1268 = vlaneseq
    %v1269 = vshrl.u32 %v1268, 7
    %v1270 = vsub.s32 %v685, %v1269
    %v1271 = vrot.slane %v485, %v1270
    %v1272 = vsel %vm690, %v1271, %v1267
    %v1273 = vlaneseq
    %v1274 = vshrl.u32 %v1273, 7
    %v1275 = vsub.s32 %v692, %v1274
    %v1276 = vrot.slane %v488, %v1275
    %v1277 = vsel %vm697, %v1276, %v1272
    %v1278 = vlaneseq
    %v1279 = vshrl.u32 %v1278, 7
    %v1280 = vsub.s32 %v699, %v1279
    %v1281 = vrot.slane %v491, %v1280
    %v1282 = vsel %vm704, %v1281, %v1277
    %v1283 = vlaneseq
    %v1284 = vshrl.u32 %v1283, 7
    %v1285 = vsub.s32 %v706, %v1284
    %v1286 = vrot.slane %v494, %v1285
    %v1287 = vsel %vm711, %v1286, %v1282
    %v1288 = vlaneseq
    %v1289 = vshrl.u32 %v1288, 7
    %v1290 = vsub.s32 %v713, %v1289
    %v1291 = vrot.slane %v497, %v1290
    %v1292 = vsel %vm718, %v1291, %v1287
    %v1293 = vlaneseq
    %v1294 = vshrl.u32 %v1293, 7
    %v1295 = vsub.s32 %v720, %v1294
    %v1296 = vrot.slane %v500, %v1295
    %v1297 = vsel %vm725, %v1296, %v1292
    %v1298 = vlaneseq
    %v1299 = vshrl.u32 %v1298, 7
    %v1300 = vsub.s32 %v727, %v1299
    %v1301 = vrot.slane %v503, %v1300
    %v1302 = vsel %vm732, %v1301, %v1297
    %v1303 = vlaneseq
    %v1304 = vshrl.u32 %v1303, 7
    %v1305 = vsub.s32 %v734, %v1304
    %v1306 = vrot.slane %v506, %v1305
    %v1307 = vsel %vm739, %v1306, %v1302
    %v1308 = vlaneseq
    %v1309 = vshrl.u32 %v1308, 7
    %v1310 = vsub.s32 %v741, %v1309
    %v1311 = vrot.slane %v509, %v1310
    %v1312 = vsel %vm746, %v1311, %v1307
    %v1313 = vlaneseq
    %v1314 = vshrl.u32 %v1313, 7
    %v1315 = vsub.s32 %v748, %v1314
    %v1316 = vrot.slane %v512, %v1315
    %v1317 = vsel %vm753, %v1316, %v1312
    %v1318 = vlaneseq
    %v1319 = vshrl.u32 %v1318, 7
    %v1320 = vsub.s32 %v755, %v1319
    %v1321 = vrot.slane %v515, %v1320
    %v1322 = vsel %vm760, %v1321, %v1317
    %v1323 = vlaneseq
    %v1324 = vshrl.u32 %v1323, 7
    %v1325 = vsub.s32 %v762, %v1324
    %v1326 = vrot.slane %v518, %v1325
    %v1327 = vsel %vm767, %v1326, %v1322
    %v1328 = vlaneseq
    %v1329 = vshrl.u32 %v1328, 7
    %v1330 = vsub.s32 %v769, %v1329
    %v1331 = vrot.slane %v521, %v1330
    %v1332 = vsel %vm774, %v1331, %v1327
    %v1333 = vlaneseq
    %v1334 = vshrl.u32 %v1333, 7
    %v1335 = vsub.s32 %v776, %v1334
    %v1336 = vrot.slane %v524, %v1335
    %v1337 = vsel %vm781, %v1336, %v1332
    %v1338 = vlaneseq
    %v1339 = vshrl.u32 %v1338, 7
    %v1340 = vsub.s32 %v783, %v1339
    %v1341 = vrot.slane %v527, %v1340
    %v1342 = vsel %vm788, %v1341, %v1337
    %vm1343 = vcmask 1041409
    %v1344 = vsel %vm1343, %v868, %v789
    %vm1345 = vcmask 1042434
    %v1346 = vsel %vm1345, %v947, %v1344
    %vm1347 = vcmask 1043459
    %v1348 = vsel %vm1347, %v1026, %v1346
    %vm1349 = vcmask 1044484
    %v1350 = vsel %vm1349, %v1105, %v1348
    %vm1351 = vcmask 1045509
    %v1352 = vsel %vm1351, %v1184, %v1350
    %vm1353 = vcmask 1046534
    %v1354 = vsel %vm1353, %v1263, %v1352
    %vm1355 = vcmask 1047559
    %v1356 = vsel %vm1355, %v1342, %v1354
    %1358 = vmatprep.subr.mxu0 0.0
    %1359 = vmatpush1.msra.mxu0 %v543
    %1360 = vmatprep.subr.mxu0 0.0
    %1361 = vmatpush1.msra.mxu0 %v542
    %1362 = vmatprep.subr.mxu0 0.0
    %1363 = vmatpush1.msra.mxu0 %v541
    %1364 = vmatprep.subr.mxu0 0.0
    %1365 = vmatpush1.msra.mxu0 %v540
    %1366 = vmatprep.subr.mxu0 0.0
    %1367 = vmatpush1.msra.mxu0 %v539
    %1368 = vmatprep.subr.mxu0 0.0
    %1369 = vmatpush1.msra.mxu0 %v538
    %1370 = vmatprep.subr.mxu0 0.0
    %1371 = vmatpush1.msra.mxu0 %v537
    %1372 = vmatprep.subr.mxu0 0.0
    %1373 = vmatpush1.msra.mxu0 %v536
    %1374 = vmatprep.subr.mxu0 0.0
    %1375 = vmatpush1.msra.mxu0 %v535
    %1376 = vmatprep.subr.mxu0 0.0
    %1377 = vmatpush1.msra.mxu0 %v534
    %1378 = vmatprep.subr.mxu0 0.0
    %1379 = vmatpush1.msra.mxu0 %v533
    %1380 = vmatprep.subr.mxu0 0.0
    %1381 = vmatpush1.msra.mxu0 %v532
    %1382 = vmatprep.subr.mxu0 0.0
    %1383 = vmatpush1.msra.mxu0 %v531
    %1384 = vmatprep.subr.mxu0 0.0
    %1385 = vmatpush1.msra.mxu0 %v530
    %1386 = vmatprep.subr.mxu0 0.0
    %1387 = vmatpush1.msra.mxu0 %v529
    %1388 = vmatprep.subr.mxu0 0.0
    %1389 = vmatpush1.msra.mxu0 %v528
    %1390 = vmatprep.subr.mxu0 0.0
    %1391 = vmatpush2.msra.mxu0 0.0
    %1392 = vmatprep.subr.mxu0 0.0
    %1393 = vmatpush2.msra.mxu0 0.0
    %1394 = vmatprep.subr.mxu0 0.0
    %1395 = vmatpush2.msra.mxu0 0.0
    %1396 = vmatprep.subr.mxu0 0.0
    %1397 = vmatpush2.msra.mxu0 0.0
    %1398 = vmatprep.subr.mxu0 0.0
    %1399 = vmatpush2.msra.mxu0 0.0
    %1400 = vmatprep.subr.mxu0 0.0
    %1401 = vmatpush2.msra.mxu0 0.0
    %1402 = vmatprep.subr.mxu0 0.0
    %1403 = vmatpush2.msra.mxu0 0.0
    %1404 = vmatprep.subr.mxu0 0.0
    %1405 = vmatpush2.msra.mxu0 0.0
    %1406 = vmatprep.subr.mxu0 0.0
    %1407 = vmatpush2.msra.mxu0 0.0
    %1408 = vmatprep.subr.mxu0 0.0
    %1409 = vmatpush2.msra.mxu0 0.0
    %1410 = vmatprep.subr.mxu0 0.0
    %1411 = vmatpush2.msra.mxu0 0.0
    %1412 = vmatprep.subr.mxu0 0.0
    %1413 = vmatpush2.msra.mxu0 0.0
    %1414 = vmatprep.subr.mxu0 0.0
    %1415 = vmatpush2.msra.mxu0 0.0
    %1416 = vmatprep.subr.mxu0 0.0
    %1417 = vmatpush2.msra.mxu0 0.0
    %1418 = vmatprep.subr.mxu0 0.0
    %1419 = vmatpush2.msra.mxu0 0.0
    %1420 = vmatprep.subr.mxu0 0.0
    %1421 = vmatpush2.msra.mxu0 0.0
    %1422 = vmatprep.mubr.f32.mxu0 0.0
    %1423 = vmatmul.mubr.f32.gmra.mxu0 %v1356
    %v1424 = vpop.f32.mrf.mxu0
    %v1425 = vadd.f32 %v549, %v1424
    %v1426 = vpop.f32.mrf.mxu0
    %1427 = vdwg.mxu0
    %1428 = vst [vmem:[#allocation2] sm:$0xff] %v1425
    // Predicated region
    $region14: #{tpu_custom_call.1} parent=1 // pred_check
      _
    $region15: #{tpu_custom_call.1} parent=1 // pred_check_branch
      %1430 = sbr.rel (0) target = $region17
    $region16: #{tpu_custom_call.1} parent=1 // pred_region
      %s1432 = ssub.s32 128, 128
      %1433 = vsyncadd [#allocation3], %s1432
      %s1435 = sshll.u32 [#allocation2], 4
      %s1436 = int_to_ptr.vmem [resolvable:$true] %s1435
      %1438 = dma.vmem_to_hbm [thread:$0]  %s1436, 128, %s3, [#allocation3]
    $region17: #{tpu_custom_call.1} parent=1 // pred_fallthru
      _
    // Predicated region
    $region18: #{tpu_custom_call.1} parent=1 // pred_check
      _
    $region19: #{tpu_custom_call.1} parent=1 // pred_check_branch
      %1440 = sbr.rel (0) target = $region21
    $region20: #{tpu_custom_call.1} parent=1 // pred_region
      %1441 = dma.done [#allocation3], 128
    $region21: #{tpu_custom_call.1} parent=1 // pred_fallthru
      _
    %1442 = vsyncpa [#allocation3], 1

</llo_original>
